<compile_context>
chip_gen: v7x
topology: tpu7x:2x2x1
jax: 0.10.0
libtpu: 0.0.40
codegen_flags: <defaults>
</compile_context>

<pallas_src>
import functools

import jax
import jax.numpy as jnp
from jax.experimental import pallas as pl
from jax.experimental.pallas import tpu as pltpu


def _pick_tile(n, pref):
    """Use the preferred tile if it divides the extent, else fall back to full extent."""
    return pref if (pref <= n and n % pref == 0) else n


# ----------------------- kernel 1: RMSNorm + QKV + RoPE -----------------------

def _norm_qkv_rope_kernel(x_ref, nw_ref, w_ref, cos_ref, sin_ref,
                          qkv_ref, xn_ref, *, eps, n_rot_heads):
    h = pl.program_id(1)

    # Normalize the activation row-tile once (h == 0) and reuse for every head.
    # (x/cos/sin block indices do not change across h, so Pallas does not re-DMA them.)
    @pl.when(h == 0)
    def _():
        xf = x_ref[...].astype(jnp.float32)
        ms = jnp.mean(xf * xf, axis=-1, keepdims=True)
        xn = xf * jax.lax.rsqrt(ms + eps) * nw_ref[...]
        xn_ref[...] = xn.astype(jnp.bfloat16)

    # Per-head projection on the MXU (bf16 operands, f32 accumulation).
    y = jnp.dot(xn_ref[...], w_ref[0], preferred_element_type=jnp.float32)   # (tm, hd)

    # RoPE in half-split layout (rotate-half).  The sign is folded into sin_ref, and the
    # Q/K weight columns were permuted host-side, so this equals the interleaved torch RoPE.
    # Q and K heads (h < n_rot_heads) are rotated, V heads skip the rotation arithmetic.
    @pl.when(h < n_rot_heads)
    def _():
        hd = y.shape[-1]
        y_swap = jnp.concatenate([y[:, hd // 2:], y[:, :hd // 2]], axis=-1)
        qkv_ref[0] = (y * cos_ref[...] + y_swap * sin_ref[...]).astype(qkv_ref.dtype)

    @pl.when(h >= n_rot_heads)
    def _():
        qkv_ref[0] = y.astype(qkv_ref.dtype)


def fused_norm_qkv_rope(x, norm_w, wqkv3, cos2, sin2s, *, eps, n_rot_heads, tm=256):
    S, D = x.shape
    Ht, _, hd = wqkv3.shape
    tm = _pick_tile(S, tm)
    grid = (S // tm, Ht)
    return pl.pallas_call(
        functools.partial(_norm_qkv_rope_kernel, eps=eps, n_rot_heads=n_rot_heads),
        out_shape=jax.ShapeDtypeStruct((Ht, S, hd), jnp.bfloat16),
        grid=grid,
        in_specs=[
            pl.BlockSpec((tm, D), lambda i, h: (i, 0)),        # x row tile
            pl.BlockSpec((1, D), lambda i, h: (0, 0)),         # norm weight
            pl.BlockSpec((1, D, hd), lambda i, h: (h, 0, 0)),  # per-head weight
            pl.BlockSpec((tm, hd), lambda i, h: (i, 0)),       # cos (half-split, tiled)
            pl.BlockSpec((tm, hd), lambda i, h: (i, 0)),       # sin (signed, half-split)
        ],
        out_specs=pl.BlockSpec((1, tm, hd), lambda i, h: (h, i, 0)),
        scratch_shapes=[pltpu.VMEM((tm, D), jnp.bfloat16)],
        compiler_params=pltpu.CompilerParams(
            dimension_semantics=("parallel", "arbitrary")),
        cost_estimate=pl.CostEstimate(
            flops=int(2 * S * D * Ht * hd + 4 * S * D),
            transcendentals=int(S),
            bytes_accessed=int(4 * S * D + 2 * Ht * D * hd + 8 * S * hd + 2 * Ht * S * hd)),
    )(x, norm_w, wqkv3, cos2, sin2s)


# ----------------------- kernel 2: causal flash attention ---------------------

def _flash_attn_kernel(q_ref, k_ref, v_ref, o_ref, m_ref, l_ref, acc_ref):
    qi = pl.program_id(1)
    ki = pl.program_id(2)
    nk = pl.num_programs(2)
    tq = q_ref.shape[1]
    tk = k_ref.shape[1]

    @pl.when(ki == 0)
    def _():
        m_ref[...] = jnp.full(m_ref.shape, -1e30, m_ref.dtype)
        l_ref[...] = jnp.zeros(l_ref.shape, l_ref.dtype)
        acc_ref[...] = jnp.zeros(acc_ref.shape, acc_ref.dtype)

    q_start = qi * tq
    k_start = ki * tk

    # Skip KV tiles that lie entirely above the causal diagonal.
    @pl.when(k_start <= q_start + tq - 1)
    def _():
        q = q_ref[0]                                          # (tq, hd) bf16 (pre-scaled)
        k = k_ref[0]                                          # (tk, hd) bf16
        s = jax.lax.dot_general(q, k, (((1,), (1,)), ((), ())),
                                preferred_element_type=jnp.float32)          # (tq, tk)
        row = q_start + jax.lax.broadcasted_iota(jnp.int32, (tq, tk), 0)
        col = k_start + jax.lax.broadcasted_iota(jnp.int32, (tq, tk), 1)
        s = jnp.where(col <= row, s, jnp.float32(-1e30))

        m_prev = m_ref[...]
        m_new = jnp.maximum(m_prev, jnp.max(s, axis=-1, keepdims=True))
        alpha = jnp.exp(m_prev - m_new)
        p = jnp.exp(s - m_new)
        l_ref[...] = alpha * l_ref[...] + jnp.sum(p, axis=-1, keepdims=True)
        acc_ref[...] = alpha * acc_ref[...] + jnp.dot(
            p.astype(v_ref.dtype), v_ref[0], preferred_element_type=jnp.float32)
        m_ref[...] = m_new

    @pl.when(ki == nk - 1)
    def _():
        o_ref[0] = (acc_ref[...] * pl.reciprocal(l_ref[...], approx=True)
                    ).astype(o_ref.dtype)


def flash_attention(qkv3, n_heads, n_kv_heads, *, tq=256, tk=256):
    Ht, S, hd = qkv3.shape
    rep = n_heads // n_kv_heads
    tq = _pick_tile(S, tq)
    tk = _pick_tile(S, tk)
    grid = (n_heads, S // tq, S // tk)
    return pl.pallas_call(
        _flash_attn_kernel,
        out_shape=jax.ShapeDtypeStruct((n_heads, S, hd), jnp.bfloat16),
        grid=grid,
        in_specs=[
            # Q head h, K/V from the shared QKV tensor; GQA via index_map (no repeat).
            pl.BlockSpec((1, tq, hd), lambda h, qi, ki: (h, qi, 0)),
            pl.BlockSpec((1, tk, hd),
                         lambda h, qi, ki: (n_heads + h // rep, ki, 0)),
            pl.BlockSpec((1, tk, hd),
                         lambda h, qi, ki: (n_heads + n_kv_heads + h // rep, ki, 0)),
        ],
        out_specs=pl.BlockSpec((1, tq, hd), lambda h, qi, ki: (h, qi, 0)),
        scratch_shapes=[pltpu.VMEM((tq, 1), jnp.float32),     # running max
                        pltpu.VMEM((tq, 1), jnp.float32),     # running denom
                        pltpu.VMEM((tq, hd), jnp.float32)],   # accumulator
        compiler_params=pltpu.CompilerParams(
            dimension_semantics=("parallel", "parallel", "arbitrary")),
        cost_estimate=pl.CostEstimate(
            flops=int(4 * n_heads * S * S * hd),
            transcendentals=int(n_heads * S * S),
            bytes_accessed=int(2 * Ht * S * hd + 2 * n_heads * S * hd)),
    )(qkv3, qkv3, qkv3)


# --------------- kernel 3: output projection + fused residual add -------------

def _out_proj_kernel(o3_ref, wo_ref, x_ref, out_ref, acc_ref):
    h = pl.program_id(1)
    nh = pl.num_programs(1)

    @pl.when(h == 0)
    def _():
        acc_ref[...] = jnp.zeros(acc_ref.shape, acc_ref.dtype)

    acc_ref[...] += jnp.dot(o3_ref[0], wo_ref[0], preferred_element_type=jnp.float32)

    @pl.when(h == nh - 1)
    def _():
        out_ref[...] = x_ref[...] + acc_ref[...]              # fused residual


def out_proj_residual(attn_o3, wo3, x, *, tm=256):
    Hq, S, hd = attn_o3.shape
    D = x.shape[1]
    tm = _pick_tile(S, tm)
    grid = (S // tm, Hq)
    return pl.pallas_call(
        _out_proj_kernel,
        out_shape=jax.ShapeDtypeStruct((S, D), jnp.float32),
        grid=grid,
        in_specs=[
            pl.BlockSpec((1, tm, hd), lambda i, h: (h, i, 0)),
            pl.BlockSpec((1, hd, D), lambda i, h: (h, 0, 0)),
            pl.BlockSpec((tm, D), lambda i, h: (i, 0)),
        ],
        out_specs=pl.BlockSpec((tm, D), lambda i, h: (i, 0)),
        scratch_shapes=[pltpu.VMEM((tm, D), jnp.float32)],
        compiler_params=pltpu.CompilerParams(
            dimension_semantics=("parallel", "arbitrary")),
        cost_estimate=pl.CostEstimate(
            flops=int(2 * S * Hq * hd * D + S * D),
            transcendentals=0,
            bytes_accessed=int(2 * Hq * S * hd + 2 * Hq * hd * D + 8 * S * D)),
    )(attn_o3, wo3, x)


# --------------- kernel 4: RMSNorm + SwiGLU FFN + fused residual --------------

def _ffn_kernel(h_ref, nw_ref, w1_ref, w3_ref, w2_ref, out_ref, hn_ref, acc_ref, *, eps):
    j = pl.program_id(1)
    nj = pl.num_programs(1)

    @pl.when(j == 0)
    def _():
        hf = h_ref[...].astype(jnp.float32)
        ms = jnp.mean(hf * hf, axis=-1, keepdims=True)
        hn_ref[...] = (hf * jax.lax.rsqrt(ms + eps) * nw_ref[...]).astype(jnp.bfloat16)
        acc_ref[...] = jnp.zeros(acc_ref.shape, acc_ref.dtype)

    hn = hn_ref[...]
    h1 = jnp.dot(hn, w1_ref[...], preferred_element_type=jnp.float32)
    h3 = jnp.dot(hn, w3_ref[...], preferred_element_type=jnp.float32)
    g = (h1 * jax.nn.sigmoid(h1)) * h3                        # SwiGLU, f32 elementwise
    acc_ref[...] += jnp.dot(g.astype(jnp.bfloat16), w2_ref[...],
                            preferred_element_type=jnp.float32)

    @pl.when(j == nj - 1)
    def _():
        out_ref[...] = h_ref[...] + acc_ref[...]              # fused residual


def ffn_residual(h, norm_w, w1, w3, w2, *, eps, tm=256, th=512):
    S, D = h.shape
    Hdim = w1.shape[1]
    tm = _pick_tile(S, tm)
    th = _pick_tile(Hdim, th)
    grid = (S // tm, Hdim // th)
    return pl.pallas_call(
        functools.partial(_ffn_kernel, eps=eps),
        out_shape=jax.ShapeDtypeStruct((S, D), jnp.float32),
        grid=grid,
        in_specs=[
            pl.BlockSpec((tm, D), lambda i, j: (i, 0)),
            pl.BlockSpec((1, D), lambda i, j: (0, 0)),
            pl.BlockSpec((D, th), lambda i, j: (0, j)),
            pl.BlockSpec((D, th), lambda i, j: (0, j)),
            pl.BlockSpec((th, D), lambda i, j: (j, 0)),
        ],
        out_specs=pl.BlockSpec((tm, D), lambda i, j: (i, 0)),
        scratch_shapes=[pltpu.VMEM((tm, D), jnp.bfloat16),    # normalized activations
                        pltpu.VMEM((tm, D), jnp.float32)],    # w2 accumulator
        compiler_params=pltpu.CompilerParams(
            dimension_semantics=("parallel", "arbitrary")),
        cost_estimate=pl.CostEstimate(
            flops=int(6 * S * D * Hdim),
            transcendentals=int(S * Hdim),
            bytes_accessed=int(12 * S * D + 6 * D * Hdim)),
    )(h, norm_w, w1, w3, w2)


# ------------------------------ host-side prep --------------------------------

def prepare_params(params, cos, sin, cfg):
    D, hd = cfg["dim"], cfg["head_dim"]
    Hq, Hkv = cfg["n_heads"], cfg["n_kv_heads"]
    Ht = Hq + 2 * Hkv

    # Permute Q/K columns inside each head: interleaved (re,im) pairs -> half-split
    # [even..., odd...].  Attention scores are invariant (same perm on q and k), so the
    # in-kernel rotate-half RoPE reproduces the interleaved torch RoPE exactly.
    perm = jnp.concatenate([jnp.arange(0, hd, 2), jnp.arange(1, hd, 2)])

    def permute_heads(w, n_h):
        return w.reshape(D, n_h, hd)[:, :, perm].reshape(D, n_h * hd)

    # Fold the 1/sqrt(head_dim) attention scale into the Q projection weights so the
    # flash-attention inner loop carries no per-score multiply.
    attn_scale = 1.0 / (hd ** 0.5)
    wq = permute_heads(params["wq"] * attn_scale, Hq)
    wk = permute_heads(params["wk"], Hkv)
    wqkv = jnp.concatenate([wq, wk, params["wv"]], axis=1)                 # (D, Ht*hd)
    wqkv3 = wqkv.reshape(D, Ht, hd).transpose(1, 0, 2).astype(jnp.bfloat16)

    return {
        "wqkv3": wqkv3,                                                    # (Ht, D, hd)
        "wo3": params["wo"].reshape(Hq, hd, D).astype(jnp.bfloat16),       # (Hq, hd, D)
        "w1": params["w1"].astype(jnp.bfloat16),
        "w2": params["w2"].astype(jnp.bfloat16),
        "w3": params["w3"].astype(jnp.bfloat16),
        "attn_norm_w": params["attn_norm_w"].reshape(1, D),
        "ffn_norm_w": params["ffn_norm_w"].reshape(1, D),
        "cos2": jnp.concatenate([cos, cos], axis=-1),                      # (S, hd)
        "sin2s": jnp.concatenate([-sin, sin], axis=-1),                    # (S, hd)
    }


def transformer_block(x, prep, cfg):
    eps = cfg["norm_eps"]
    Hq, Hkv = cfg["n_heads"], cfg["n_kv_heads"]

    # attention: fused RMSNorm+QKV+RoPE -> flash attention -> wo + residual
    qkv3 = fused_norm_qkv_rope(x, prep["attn_norm_w"], prep["wqkv3"],
                               prep["cos2"], prep["sin2s"],
                               eps=eps, n_rot_heads=Hq + Hkv)
    attn_o3 = flash_attention(qkv3, Hq, Hkv)
    h = out_proj_residual(attn_o3, prep["wo3"], x)

    # feed forward: fused RMSNorm + SwiGLU + w2 accumulation + residual
    return ffn_residual(h, prep["ffn_norm_w"], prep["w1"], prep["w3"], prep["w2"], eps=eps)


# --------------------------- pure-JAX f32 reference ----------------------------

def apply_rotary_interleaved(x, cos, sin):
    xr = x[..., 0::2]
    xi = x[..., 1::2]
    c = cos[:, None, :]
    s = sin[:, None, :]
    out_r = xr * c - xi * s
    out_i = xr * s + xi * c
    return jnp.stack([out_r, out_i], axis=-1).reshape(x.shape)


def reference_block(x, params, cos, sin, cfg):
    n_heads, n_kv, hd = cfg["n_heads"], cfg["n_kv_heads"], cfg["head_dim"]
    eps = cfg["norm_eps"]
    S, D = x.shape

    def rms(x, w):
        ms = jnp.mean(x.astype(jnp.float32) ** 2, axis=-1, keepdims=True)
        return x * jax.lax.rsqrt(ms + eps) * w

    xn = rms(x, params["attn_norm_w"])
    xq = (xn @ params["wq"]).reshape(S, n_heads, hd)
    xk = (xn @ params["wk"]).reshape(S, n_kv, hd)
    xv = (xn @ params["wv"]).reshape(S, n_kv, hd)
    xq = apply_rotary_interleaved(xq, cos, sin)
    xk = apply_rotary_interleaved(xk, cos, sin)
    key = jnp.repeat(xk, n_heads // n_kv, axis=1)
    val = jnp.repeat(xv, n_heads // n_kv, axis=1)
    q = jnp.transpose(xq, (1, 0, 2))
    k = jnp.transpose(key, (1, 0, 2))
    v = jnp.transpose(val, (1, 0, 2))
    s = jnp.einsum('hqd,hkd->hqk', q, k) / (hd ** 0.5)
    mask = jnp.tril(jnp.ones((S, S), dtype=bool))[None]
    s = jnp.where(mask, s, -jnp.inf)
    p = jax.nn.softmax(s, axis=-1)
    o = jnp.einsum('hqk,hkd->hqd', p, v)
    o = jnp.transpose(o, (1, 0, 2)).reshape(S, n_heads * hd)
    h = x + o @ params["wo"]

    hn = rms(h, params["ffn_norm_w"])
    h1 = hn @ params["w1"]
    h3 = hn @ params["w3"]
    g = jax.nn.silu(h1) * h3
    return h + g @ params["w2"]


# ----------------------------------- main --------------------------------------

if __name__ == "__main__":
    cfg = dict(dim=32, head_dim=8, hidden_dim=64, n_heads=4, n_kv_heads=2,
               norm_eps=1e-5, rope_theta=10000.0)
    S = 8
    D, hd = cfg["dim"], cfg["head_dim"]

    key = jax.random.PRNGKey(0)
    ks = jax.random.split(key, 9)
    scale = 0.02
    params = {
        # stored as (in, out) = torch Linear weight transposed
        "wq": scale * jax.random.normal(ks[0], (D, cfg["n_heads"] * hd), jnp.float32),
        "wk": scale * jax.random.normal(ks[1], (D, cfg["n_kv_heads"] * hd), jnp.float32),
        "wv": scale * jax.random.normal(ks[2], (D, cfg["n_kv_heads"] * hd), jnp.float32),
        "wo": scale * jax.random.normal(ks[3], (cfg["n_heads"] * hd, D), jnp.float32),
        "w1": scale * jax.random.normal(ks[4], (D, cfg["hidden_dim"]), jnp.float32),
        "w2": scale * jax.random.normal(ks[5], (cfg["hidden_dim"], D), jnp.float32),
        "w3": scale * jax.random.normal(ks[6], (D, cfg["hidden_dim"]), jnp.float32),
        "attn_norm_w": jnp.ones((D,), jnp.float32),
        "ffn_norm_w": jnp.ones((D,), jnp.float32),
    }

    x = jax.random.normal(ks[7], (S, D), jnp.float32)

    # rotary frequencies (freqs_cis as cos/sin), positions 0..S-1
    inv_freq = 1.0 / (cfg["rope_theta"] ** (jnp.arange(0, hd, 2, dtype=jnp.float32) / hd))
    angles = jnp.outer(jnp.arange(S, dtype=jnp.float32), inv_freq)   # (S, hd//2)
    cos, sin = jnp.cos(angles), jnp.sin(angles)

    prep = prepare_params(params, cos, sin, cfg)
    out = transformer_block(x, prep, cfg)
    out = jax.block_until_ready(out)

    ref = reference_block(x, params, cos, sin, cfg)
    assert out.shape == (S, D) and out.dtype == jnp.float32
    # bf16 MXU operands with f32 accumulation vs. pure-f32 reference -> relaxed tolerance.
    assert jnp.allclose(out, ref, rtol=2e-2, atol=2e-2), "mismatch vs reference"

    # TODO(synk): xformers BlockDiagonalCausalMask (packed multi-sequence) is realized
    # here as a single-sequence causal mask; dropout is eval-mode identity.
    print("KERNEL_OK")
</pallas_src>

<mosaic_0001>
module attributes {stable_mosaic.version = 11 : i64} {
  func.func @_norm_qkv_rope_kernel(%arg0: i32, %arg1: i32, %arg2: memref<8x32xf32, #tpu.memory_space<vmem>>, %arg3: memref<1x32xf32, #tpu.memory_space<vmem>>, %arg4: memref<1x32x8xbf16, #tpu.memory_space<vmem>>, %arg5: memref<8x8xf32, #tpu.memory_space<vmem>>, %arg6: memref<8x8xf32, #tpu.memory_space<vmem>>, %arg7: memref<1x8x8xbf16, #tpu.memory_space<vmem>>, %arg8: memref<8x32xbf16, #tpu.memory_space<vmem>>) attributes {dimension_semantics = [#tpu.dimension_semantics<parallel>, #tpu.dimension_semantics<arbitrary>], iteration_bounds = array<i64: 1, 8>, scalar_prefetch = 0 : i64, scratch_operands = 1 : i64, tpu.core_type = #tpu.core_type<tc>, window_params = [{transform_indices = @transform_0, window_bounds = array<i64: 8, 32>}, {pipeline_mode = #tpu.pipeline_mode<synchronous>, transform_indices = @transform_1, window_bounds = array<i64: 1, 32>}, {transform_indices = @transform_2, window_bounds = array<i64: 1, 32, 8>}, {transform_indices = @transform_3, window_bounds = array<i64: 8, 8>}, {transform_indices = @transform_4, window_bounds = array<i64: 8, 8>}, {transform_indices = @transform_5, window_bounds = array<i64: 1, 8, 8>}]} {
    %c0_i32 = arith.constant 0 : i32
    %0 = arith.cmpi eq, %arg1, %c0_i32 : i32
    %1 = arith.extui %0 : i1 to i32
    %c0_i32_0 = arith.constant 0 : i32
    %2 = arith.cmpi ne, %1, %c0_i32_0 : i32
    scf.if %2 {
      %c0_8 = arith.constant 0 : index
      %c0_9 = arith.constant 0 : index
      %13 = vector.load %arg2[%c0_8, %c0_9] : memref<8x32xf32, #tpu.memory_space<vmem>>, vector<8x32xf32>
      %14 = arith.mulf %13, %13 : vector<8x32xf32>
      %cst_10 = arith.constant dense<0.000000e+00> : vector<8xf32>
      %15 = vector.multi_reduction <add>, %14, %cst_10 [1] : vector<8x32xf32> to vector<8xf32>
      %16 = vector.shape_cast %15 : vector<8xf32> to vector<8x1xf32>
      %cst_11 = arith.constant 3.200000e+01 : f32
      %17 = vector.broadcast %cst_11 : f32 to vector<8x1xf32>
      %18 = arith.divf %16, %17 : vector<8x1xf32>
      %cst_12 = arith.constant 9.99999974E-6 : f32
      %19 = vector.broadcast %cst_12 : f32 to vector<8x1xf32>
      %20 = arith.addf %18, %19 : vector<8x1xf32>
      %21 = math.rsqrt %20 : vector<8x1xf32>
      %22 = vector.broadcast %21 : vector<8x1xf32> to vector<8x32xf32>
      %23 = arith.mulf %13, %22 : vector<8x32xf32>
      %c0_13 = arith.constant 0 : index
      %c0_14 = arith.constant 0 : index
      %24 = vector.load %arg3[%c0_13, %c0_14] : memref<1x32xf32, #tpu.memory_space<vmem>>, vector<1x32xf32>
      %25 = vector.broadcast %24 : vector<1x32xf32> to vector<8x32xf32>
      %26 = arith.mulf %23, %25 : vector<8x32xf32>
      %27 = arith.truncf %26 : vector<8x32xf32> to vector<8x32xbf16>
      %c0_15 = arith.constant 0 : index
      %c0_16 = arith.constant 0 : index
      %28 = vector.load %arg8[%c0_15, %c0_16] : memref<8x32xbf16, #tpu.memory_space<vmem>>, vector<8x32xbf16>
      tpu.vector_store %arg8[%c0_15, %c0_16], %27 {strides = array<i32>} : memref<8x32xbf16, #tpu.memory_space<vmem>>, vector<8x32xbf16>,
    } else {
    }
    %c0 = arith.constant 0 : index
    %c0_1 = arith.constant 0 : index
    %3 = vector.load %arg8[%c0, %c0_1] : memref<8x32xbf16, #tpu.memory_space<vmem>>, vector<8x32xbf16>
    %c0_2 = arith.constant 0 : index
    %c0_3 = arith.constant 0 : index
    %c0_4 = arith.constant 0 : index
    %4 = vector.load %arg4[%c0_2, %c0_3, %c0_4] : memref<1x32x8xbf16, #tpu.memory_space<vmem>>, vector<1x32x8xbf16>
    %5 = vector.shape_cast %4 : vector<1x32x8xbf16> to vector<32x8xbf16>
    %cst = arith.constant dense<0.000000e+00> : vector<8x8xf32>
    %6 = tpu.matmul %3, %5, %cst {dimension_numbers = #tpu.dot_dimension_numbers<[1], [0], [0], [1], [0, 0, 1, 1], [], []>} : vector<8x32xbf16>, vector<32x8xbf16>, vector<8x8xf32> -> vector<8x8xf32>
    %c6_i32 = arith.constant 6 : i32
    %7 = arith.cmpi slt, %arg1, %c6_i32 : i32
    %8 = arith.extui %7 : i1 to i32
    %c0_i32_5 = arith.constant 0 : i32
    %9 = arith.cmpi ne, %8, %c0_i32_5 : i32
    scf.if %9 {
      %13 = vector.extract_strided_slice %6 {offsets = [0, 4], sizes = [8, 4], strides = [1, 1]} : vector<8x8xf32> to vector<8x4xf32>
      %14 = vector.extract_strided_slice %6 {offsets = [0, 0], sizes = [8, 4], strides = [1, 1]} : vector<8x8xf32> to vector<8x4xf32>
      %15 = tpu.concatenate %13, %14 in 1 : vector<8x4xf32>, vector<8x4xf32> -> vector<8x8xf32>
      %c0_8 = arith.constant 0 : index
      %c0_9 = arith.constant 0 : index
      %16 = vector.load %arg5[%c0_8, %c0_9] : memref<8x8xf32, #tpu.memory_space<vmem>>, vector<8x8xf32>
      %17 = arith.mulf %6, %16 : vector<8x8xf32>
      %c0_10 = arith.constant 0 : index
      %c0_11 = arith.constant 0 : index
      %18 = vector.load %arg6[%c0_10, %c0_11] : memref<8x8xf32, #tpu.memory_space<vmem>>, vector<8x8xf32>
      %19 = arith.mulf %15, %18 : vector<8x8xf32>
      %20 = arith.addf %17, %19 : vector<8x8xf32>
      %21 = arith.truncf %20 : vector<8x8xf32> to vector<8x8xbf16>
      %c0_12 = arith.constant 0 : index
      %c0_13 = arith.constant 0 : index
      %c0_14 = arith.constant 0 : index
      %22 = vector.load %arg7[%c0_12, %c0_13, %c0_14] : memref<1x8x8xbf16, #tpu.memory_space<vmem>>, vector<1x8x8xbf16>
      %23 = vector.shape_cast %22 : vector<1x8x8xbf16> to vector<8x8xbf16>
      %24 = vector.shape_cast %21 : vector<8x8xbf16> to vector<1x8x8xbf16>
      tpu.vector_store %arg7[%c0_12, %c0_13, %c0_14], %24 {strides = array<i32>} : memref<1x8x8xbf16, #tpu.memory_space<vmem>>, vector<1x8x8xbf16>,
    } else {
    }
    %c6_i32_6 = arith.constant 6 : i32
    %10 = arith.cmpi sge, %arg1, %c6_i32_6 : i32
    %11 = arith.extui %10 : i1 to i32
    %c0_i32_7 = arith.constant 0 : i32
    %12 = arith.cmpi ne, %11, %c0_i32_7 : i32
    scf.if %12 {
      %13 = arith.truncf %6 : vector<8x8xf32> to vector<8x8xbf16>
      %c0_8 = arith.constant 0 : index
      %c0_9 = arith.constant 0 : index
      %c0_10 = arith.constant 0 : index
      %14 = vector.load %arg7[%c0_8, %c0_9, %c0_10] : memref<1x8x8xbf16, #tpu.memory_space<vmem>>, vector<1x8x8xbf16>
      %15 = vector.shape_cast %14 : vector<1x8x8xbf16> to vector<8x8xbf16>
      %16 = vector.shape_cast %13 : vector<8x8xbf16> to vector<1x8x8xbf16>
      tpu.vector_store %arg7[%c0_8, %c0_9, %c0_10], %16 {strides = array<i32>} : memref<1x8x8xbf16, #tpu.memory_space<vmem>>, vector<1x8x8xbf16>,
    } else {
    }
    return
  }
  func.func @transform_0(%arg0: i32, %arg1: i32) -> (i32, i32) {
    %c0_i32 = arith.constant 0 : i32
    %c0_i32_0 = arith.constant 0 : i32
    return %arg0, %c0_i32 : i32, i32
  }
  func.func @transform_1(%arg0: i32, %arg1: i32) -> (i32, i32) {
    %c0_i32 = arith.constant 0 : i32
    %c0_i32_0 = arith.constant 0 : i32
    %c0_i32_1 = arith.constant 0 : i32
    return %c0_i32, %c0_i32_0 : i32, i32
  }
  func.func @transform_2(%arg0: i32, %arg1: i32) -> (i32, i32, i32) {
    %c0_i32 = arith.constant 0 : i32
    %c0_i32_0 = arith.constant 0 : i32
    %c0_i32_1 = arith.constant 0 : i32
    return %arg1, %c0_i32, %c0_i32_0 : i32, i32, i32
  }
  func.func @transform_3(%arg0: i32, %arg1: i32) -> (i32, i32) {
    %c0_i32 = arith.constant 0 : i32
    %c0_i32_0 = arith.constant 0 : i32
    return %arg0, %c0_i32 : i32, i32
  }
  func.func @transform_4(%arg0: i32, %arg1: i32) -> (i32, i32) {
    %c0_i32 = arith.constant 0 : i32
    %c0_i32_0 = arith.constant 0 : i32
    return %arg0, %c0_i32 : i32, i32
  }
  func.func @transform_5(%arg0: i32, %arg1: i32) -> (i32, i32, i32) {
    %c0_i32 = arith.constant 0 : i32
    %c0_i32_0 = arith.constant 0 : i32
    return %arg1, %arg0, %c0_i32 : i32, i32, i32
  }
}

</mosaic_0001>

<llo_original>
// kernel: tpu_custom_call.1
$region0: #{tpu_custom_call.1}
  #allocation0 [shape = 'u32[]', space=smem, size = 0x4, offset = 0x4, fixed_abs, tag = 'smem constant byte address 0x4 - core index']
  #allocation1 [shape = 'u32[144,128]{1,0:T(1,128)}', space=vmem, size = 0x12000, scoped, tag = 'internal scratch']
  #allocation2 [shape = 'bf16[8,32]{1,0:T(8,128)(2,1)}', space=vmem, size = 0x800, scoped, tag = 'scratch operand']
  %s0 = inlined_call_operand.vmem [shape: f32[8,32], index: 0, kind: input, shape index: {}]
  %s1 = inlined_call_operand.vmem [shape: f32[1,32], index: 1, kind: input, shape index: {}]
  %s2 = inlined_call_operand.vmem [shape: bf16[8,32,8], index: 2, kind: input, shape index: {}]
  %s3 = inlined_call_operand.vmem [shape: f32[8,8], index: 3, kind: input, shape index: {}]
  %s4 = inlined_call_operand.vmem [shape: f32[8,8], index: 4, kind: input, shape index: {}]
  %s5 = inlined_call_operand.hbm [shape: bf16[8,8,8], index: 5, kind: output, shape index: {}]
  %s6 = sld [smem:[#allocation0]]
  $region65: #{tpu_custom_call.1} parent=0
    _
  %s8 = ssub.s32 1, %s6
  %s9 = scalar_select 0, %s8, %s6
  $region1: #{tpu_custom_call.1} parent=0
    #allocation3 [shape = 'u8[4096]{0}', space=vmem, size = 0x1000, scoped, tag = 'output window, operand 0']
    #allocation4 [shape = 's32[2]{0}', space=sflag, size = 0x8, scoped, tag = 'scoped memory for tpu_custom_call.1']
    %10 = vsyncpa [#allocation4], 0
    %s11 = scalar_lea.sflag [#allocation4], 1
    %12 = vsyncpa %s11, 0
    loop: start=0, step=1, limit=10
    $region2: #{tpu_custom_call.1} parent=1 // loop_pre_header
      _
    $region3: #{tpu_custom_call.1} parent=1 // loop_header
      %s14 = sphi 0, %s18
      %p15 = scmp.ge.s32.totalorder %s14, 10
      %s21 = sphi 0, %s33
      %s22 = sphi 0, %s29
      %s23 = sphi 0, %s21
      %s24 = sphi 0, %s22
      %s25 = sphi 0, %s23
      %s26 = sphi 0, %s24
      %s36 = sphi 0, %s38
      %s39 = sphi 0, %s36
      %s40 = sphi 0, %s39
      %s56 = sphi 0, %s40
      %s60 = sphi 0, %s60
      %s62 = sphi 0, %s60
      %s63 = sphi 0, %s62
      %s77 = sphi 0, %s63
      %s83 = sphi 0, %s85
      %s86 = sphi 0, %s83
      %s87 = sphi 0, %s86
      %s103 = sphi 0, %s87
      %s109 = sphi 0, %s111
      %s112 = sphi 0, %s109
      %s113 = sphi 0, %s112
      %s129 = sphi 0, %s113
      %s135 = sphi 0, %s137
      %s138 = sphi 0, %s135
      %s139 = sphi 0, %s138
      %s155 = sphi 0, %s139
      %s163 = sphi 0, %s165
      %s166 = sphi 0, %s163
      %s167 = sphi 0, %s166
      %s183 = sphi 0, %s167
    $region4: #{tpu_custom_call.1} parent=1 // loop_header_branch
      %17 = sbr.rel (%p15) target = $region8
    $region5: #{tpu_custom_call.1} parent=1 // loop_body
      %s19 = ssub.s32 %s14, 1
      %s20 = ssub.s32 %s14, 2
      %s27 = sadd.s32 1, %s22
      %p28 = scmp.ge.s32.totalorder %s27, 8
      %s29 = scalar_select %p28, 0, %s27
      %s30 = sadd.s32 1, %s21
      %s31 = scalar_select %p28, %s30, %s21
      %p32 = scmp.ge.s32.totalorder %s31, 1
      %s33 = scalar_select %p32, 0, %s31
      %s34 = ssub.s32 %s21, %s33
      %p35 = scmp.eq.s32.totalorder %s34, 0
      %s37 = sadd.s32 %s36, 1
      %s38 = scalar_select %p35, %s36, %s37
      %p41 = pneg %p35
      %p42 = scmp.eq.s32.totalorder %s14, 7
      %p43 = por %p41, %p42
      %p44 = scmp.ne.s32.totalorder %s36, %s39
      %p45 = scmp.eq.s32.totalorder %s14, 0
      %p46 = por %p44, %p45
      %p47 = scmp.ne.s32.totalorder %s36, %s39
      %p48 = scmp.eq.s32.totalorder %s19, 7
      %p49 = por %p47, %p48
      %p50 = scmp.ne.s32.totalorder %s39, %s40
      %p51 = scmp.eq.s32.totalorder %s19, 0
      %p52 = por %p50, %p51
      %p53 = scmp.ne.s32.totalorder %s39, %s40
      %p54 = scmp.eq.s32.totalorder %s20, 7
      %p55 = por %p53, %p54
      %p57 = scmp.ne.s32.totalorder %s40, %s56
      %p58 = scmp.eq.s32.totalorder %s20, 0
      %p59 = por %p57, %p58
      %s61 = sadd.s32 %s60, 1
      %p64 = scmp.eq.s32.totalorder %s14, 7
      %p65 = scmp.ne.s32.totalorder %s60, %s62
      %p66 = scmp.eq.s32.totalorder %s14, 0
      %p67 = por %p65, %p66
      %p68 = scmp.ne.s32.totalorder %s60, %s62
      %p69 = scmp.eq.s32.totalorder %s19, 7
      %p70 = por %p68, %p69
      %p71 = scmp.ne.s32.totalorder %s62, %s63
      %p72 = scmp.eq.s32.totalorder %s19, 0
      %p73 = por %p71, %p72
      %p74 = scmp.ne.s32.totalorder %s62, %s63
      %p75 = scmp.eq.s32.totalorder %s20, 7
      %p76 = por %p74, %p75
      %p78 = scmp.ne.s32.totalorder %s63, %s77
      %p79 = scmp.eq.s32.totalorder %s20, 0
      %p80 = por %p78, %p79
      %s81 = ssub.s32 %s22, %s29
      %p82 = scmp.eq.s32.totalorder %s81, 0
      %s84 = sadd.s32 %s83, 1
      %s85 = scalar_select %p82, %s83, %s84
      %p88 = pneg %p82
      %p89 = scmp.eq.s32.totalorder %s14, 7
      %p90 = por %p88, %p89
      %p91 = scmp.ne.s32.totalorder %s83, %s86
      %p92 = scmp.eq.s32.totalorder %s14, 0
      %p93 = por %p91, %p92
      %p94 = scmp.ne.s32.totalorder %s83, %s86
      %p95 = scmp.eq.s32.totalorder %s19, 7
      %p96 = por %p94, %p95
      %p97 = scmp.ne.s32.totalorder %s86, %s87
      %p98 = scmp.eq.s32.totalorder %s19, 0
      %p99 = por %p97, %p98
      %p100 = scmp.ne.s32.totalorder %s86, %s87
      %p101 = scmp.eq.s32.totalorder %s20, 7
      %p102 = por %p100, %p101
      %p104 = scmp.ne.s32.totalorder %s87, %s103
      %p105 = scmp.eq.s32.totalorder %s20, 0
      %p106 = por %p104, %p105
      %s107 = ssub.s32 %s21, %s33
      %p108 = scmp.eq.s32.totalorder %s107, 0
      %s110 = sadd.s32 %s109, 1
      %s111 = scalar_select %p108, %s109, %s110
      %p114 = pneg %p108
      %p115 = scmp.eq.s32.totalorder %s14, 7
      %p116 = por %p114, %p115
      %p117 = scmp.ne.s32.totalorder %s109, %s112
      %p118 = scmp.eq.s32.totalorder %s14, 0
      %p119 = por %p117, %p118
      %p120 = scmp.ne.s32.totalorder %s109, %s112
      %p121 = scmp.eq.s32.totalorder %s19, 7
      %p122 = por %p120, %p121
      %p123 = scmp.ne.s32.totalorder %s112, %s113
      %p124 = scmp.eq.s32.totalorder %s19, 0
      %p125 = por %p123, %p124
      %p126 = scmp.ne.s32.totalorder %s112, %s113
      %p127 = scmp.eq.s32.totalorder %s20, 7
      %p128 = por %p126, %p127
      %p130 = scmp.ne.s32.totalorder %s113, %s129
      %p131 = scmp.eq.s32.totalorder %s20, 0
      %p132 = por %p130, %p131
      %s133 = ssub.s32 %s21, %s33
      %p134 = scmp.eq.s32.totalorder %s133, 0
      %s136 = sadd.s32 %s135, 1
      %s137 = scalar_select %p134, %s135, %s136
      %p140 = pneg %p134
      %p141 = scmp.eq.s32.totalorder %s14, 7
      %p142 = por %p140, %p141
      %p143 = scmp.ne.s32.totalorder %s135, %s138
      %p144 = scmp.eq.s32.totalorder %s14, 0
      %p145 = por %p143, %p144
      %p146 = scmp.ne.s32.totalorder %s135, %s138
      %p147 = scmp.eq.s32.totalorder %s19, 7
      %p148 = por %p146, %p147
      %p149 = scmp.ne.s32.totalorder %s138, %s139
      %p150 = scmp.eq.s32.totalorder %s19, 0
      %p151 = por %p149, %p150
      %p152 = scmp.ne.s32.totalorder %s138, %s139
      %p153 = scmp.eq.s32.totalorder %s20, 7
      %p154 = por %p152, %p153
      %p156 = scmp.ne.s32.totalorder %s139, %s155
      %p157 = scmp.eq.s32.totalorder %s20, 0
      %p158 = por %p156, %p157
      %s159 = ssub.s32 %s22, %s29
      %s160 = ssub.s32 %s21, %s33
      %s161 = sor.u32 %s159, %s160
      %p162 = scmp.eq.s32.totalorder %s161, 0
      %s164 = sadd.s32 %s163, 1
      %s165 = scalar_select %p162, %s163, %s164
      %p168 = pneg %p162
      %p169 = scmp.eq.s32.totalorder %s14, 7
      %p170 = por %p168, %p169
      %p171 = scmp.ne.s32.totalorder %s163, %s166
      %p172 = scmp.eq.s32.totalorder %s14, 0
      %p173 = por %p171, %p172
      %p174 = scmp.ne.s32.totalorder %s163, %s166
      %p175 = scmp.eq.s32.totalorder %s19, 7
      %p176 = por %p174, %p175
      %p177 = scmp.ne.s32.totalorder %s166, %s167
      %p178 = scmp.eq.s32.totalorder %s19, 0
      %p179 = por %p177, %p178
      %p180 = scmp.ne.s32.totalorder %s166, %s167
      %p181 = scmp.eq.s32.totalorder %s20, 7
      %p182 = por %p180, %p181
      %p184 = scmp.ne.s32.totalorder %s167, %s183
      %p185 = scmp.eq.s32.totalorder %s20, 0
      %p186 = por %p184, %p185
      %p187 = scmp.le.s32.totalorder 1, %s14
      %p188 = scmp.lt.s32.totalorder %s14, 9
      %p189 = pnand %p187, %p188
      %p190 = pneg %p189
      // Predicated region
      $region9: #{tpu_custom_call.1} parent=5 // pred_check
        _
      $region10: #{tpu_custom_call.1} parent=5 // pred_check_branch
        %192 = sbr.rel (%p189) target = $region12
      $region11: #{tpu_custom_call.1} parent=5 // pred_region
        %s193 = ssub.s32 %s14, 1
        // Predicated region
        $region13: #{tpu_custom_call.1} parent=11 // pred_check
          %p194 = pneg %p52
        $region14: #{tpu_custom_call.1} parent=11 // pred_check_branch
          %196 = sbr.rel (%p194) target = $region16
        $region15: #{tpu_custom_call.1} parent=11 // pred_region
          %p197 = scmp.lt.s32.totalorder %s23, 0
          %s198 = scalar_select %p197, %s23, 0
          %s199 = smul.addr %s198, 8
          %s200 = scalar_lea.vmem %s0, %s199
        $region16: #{tpu_custom_call.1} parent=11 // pred_fallthru
          _
        // Predicated region
        $region17: #{tpu_custom_call.1} parent=11 // pred_check
          %p201 = pneg %p73
        $region18: #{tpu_custom_call.1} parent=11 // pred_check_branch
          %203 = sbr.rel (%p201) target = $region20
        $region19: #{tpu_custom_call.1} parent=11 // pred_region
          _
        $region20: #{tpu_custom_call.1} parent=11 // pred_fallthru
          _
        // Predicated region
        $region21: #{tpu_custom_call.1} parent=11 // pred_check
          %p204 = pneg %p125
        $region22: #{tpu_custom_call.1} parent=11 // pred_check_branch
          %206 = sbr.rel (%p204) target = $region24
        $region23: #{tpu_custom_call.1} parent=11 // pred_region
          %p207 = scmp.lt.s32.totalorder %s23, 0
          %s208 = scalar_select %p207, %s23, 0
          %s209 = smul.addr %s208, 8
          %s210 = scalar_lea.vmem %s3, %s209
        $region24: #{tpu_custom_call.1} parent=11 // pred_fallthru
          _
        // Predicated region
        $region25: #{tpu_custom_call.1} parent=11 // pred_check
          %p211 = pneg %p151
        $region26: #{tpu_custom_call.1} parent=11 // pred_check_branch
          %213 = sbr.rel (%p211) target = $region28
        $region27: #{tpu_custom_call.1} parent=11 // pred_region
          %p214 = scmp.lt.s32.totalorder %s23, 0
          %s215 = scalar_select %p214, %s23, 0
          %s216 = smul.addr %s215, 8
          %s217 = scalar_lea.vmem %s4, %s216
        $region28: #{tpu_custom_call.1} parent=11 // pred_fallthru
          _
      $region12: #{tpu_custom_call.1} parent=5 // pred_fallthru
        _
      %p218 = scmp.lt.s32.totalorder %s14, 8
      // Predicated region
      $region29: #{tpu_custom_call.1} parent=5 // pred_check
        %p219 = pneg %p218
      $region30: #{tpu_custom_call.1} parent=5 // pred_check_branch
        %221 = sbr.rel (%p219) target = $region32
      $region31: #{tpu_custom_call.1} parent=5 // pred_region
        // Predicated region
        $region33: #{tpu_custom_call.1} parent=31 // pred_check
          %p222 = pneg %p93
        $region34: #{tpu_custom_call.1} parent=31 // pred_check_branch
          %224 = sbr.rel (%p222) target = $region36
        $region35: #{tpu_custom_call.1} parent=31 // pred_region
          %p225 = scmp.lt.s32.totalorder %s22, 7
          %s226 = scalar_select %p225, %s22, 7
          %s227 = smul.addr %s226, 4
          %s228 = smul.addr %s227, 4
          %s229 = scalar_lea.vmem %s2, %s228
        $region36: #{tpu_custom_call.1} parent=31 // pred_fallthru
          _
      $region32: #{tpu_custom_call.1} parent=5 // pred_fallthru
        _
      %p230 = scmp.le.s32.totalorder 1, %s14
      %p231 = scmp.lt.s32.totalorder %s14, 9
      %p232 = pnand %p230, %p231
      %p233 = pneg %p232
      // Predicated region
      $region37: #{tpu_custom_call.1} parent=5 // pred_check
        _
      $region38: #{tpu_custom_call.1} parent=5 // pred_check_branch
        %235 = sbr.rel (%p232) target = $region40
      $region39: #{tpu_custom_call.1} parent=5 // pred_region
        %s236 = ssub.s32 %s14, 1
        %p237 = scmp.lt.s32.totalorder %s23, 0
        %s238 = scalar_select %p237, %s23, 0
        %s239 = smul.addr %s238, 8
        %s240 = scalar_lea.vmem %s0, %s239
        %p241 = pneg %p52
        %p242 = pneg %p49
        %p243 = pneg %p73
        %p244 = pneg %p70
        %p245 = scmp.lt.s32.totalorder %s24, 7
        %s246 = scalar_select %p245, %s24, 7
        %s247 = smul.addr %s246, 4
        %s248 = smul.addr %s247, 4
        %s249 = scalar_lea.vmem %s2, %s248
        %p250 = pneg %p99
        %p251 = pneg %p96
        %p252 = scmp.lt.s32.totalorder %s23, 0
        %s253 = scalar_select %p252, %s23, 0
        %s254 = smul.addr %s253, 8
        %s255 = scalar_lea.vmem %s3, %s254
        %p256 = pneg %p125
        %p257 = pneg %p122
        %p258 = scmp.lt.s32.totalorder %s23, 0
        %s259 = scalar_select %p258, %s23, 0
        %s260 = smul.addr %s259, 8
        %s261 = scalar_lea.vmem %s4, %s260
        %p262 = pneg %p151
        %p263 = pneg %p148
        %p264 = pneg %p179
        %p265 = pneg %p176
        %s266 = sand.u32 %s166, 1
        %s267 = scalar_lea.sflag [#allocation4], %s266
        %s268 = sand.u32 %s166, 1
        %s269 = smul.addr %s268, 4
        %s270 = scalar_lea.vmem [#allocation3], %s269
        %p271 = scmp.lt.s32.totalorder %s23, 0
        %s272 = scalar_select %p271, %s23, 0
        %s273 = smul.addr %s272, 8
        %s274 = scalar_lea.vmem %s0, %s273
        %p275 = scmp.lt.s32.totalorder %s24, 7
        %s276 = scalar_select %p275, %s24, 7
        %s277 = smul.addr %s276, 4
        %s278 = smul.addr %s277, 4
        %s279 = scalar_lea.vmem %s2, %s278
        %p280 = scmp.lt.s32.totalorder %s23, 0
        %s281 = scalar_select %p280, %s23, 0
        %s282 = smul.addr %s281, 8
        %s283 = scalar_lea.vmem %s3, %s282
        %p284 = scmp.lt.s32.totalorder %s23, 0
        %s285 = scalar_select %p284, %s23, 0
        %s286 = smul.addr %s285, 8
        %s287 = scalar_lea.vmem %s4, %s286
        %p289 = scmp.eq.s32.totalorder %s24, 0
        // Predicated region
        $region41: #{tpu_custom_call.1} parent=39 // pred_check
          %p290 = pneg %p289
        $region42: #{tpu_custom_call.1} parent=39 // pred_check_branch
          %292 = sbr.rel (%p290) target = $region44
        $region43: #{tpu_custom_call.1} parent=39 // pred_region
          %v293 = vld [vmem:[%s274] sm:$0xff]
          %v294 = vmul.f32 %v293, %v293
          %vm295 = vcmask 261120
          %v296 = vsel %vm295, %v294, 0.0
          %297 = vadd.xlane.f32.xlu0 %v296
          %v298 = vpop.xlane.xlu0 %297
          %v299 = vrcp.pop 32.0
          %v300 = vmul.f32 %v298, %v299
          %v301 = vadd.f32 %v300, 1e-05
          %v302 = vrsqrt.pop %v301
          %v303 = vmul.f32 %v293, %v302
          %v304 = vld [vmem:[%s1] sm:$0x1]
          %v306 = vlaneseq
          %v307 = vshrl.u32 %v306, 7
          %v308 = vsub.s32 0, %v307
          %v309 = vrot.slane %v304, %v308
          %v311 = vmul.f32 %v303, %v309
          %v312 = vpack.c.bf16 %v311, %v311
          %vm313 = vcmask 257024
          %314 = vst.msk [vmem:[#allocation2] sm:$0xf] %vm313, %v312
        $region44: #{tpu_custom_call.1} parent=39 // pred_fallthru
          _
        %v315 = vld [vmem:[#allocation2] sm:$0xf]
        %v316 = vld [vmem:[%s279] sm:$0xf]
        %v317 = vld [vmem:[%s279 + $0x4] sm:$0xf]
        %v318 = vld [vmem:[%s279 + $0x8] sm:$0xf]
        %v319 = vld [vmem:[%s279 + $0xc] sm:$0xf]
        %v324 = vunpack.c.l.b16 %v316
        %v325 = vunpack.c.l.b16 %v317
        %v326 = vunpack.c.l.b16 %v318
        %v327 = vunpack.c.l.b16 %v319
        %v328 = vpack.c.b16 %v325, %v324
        %v329 = vpack.c.b16 %v327, %v326
        %vm332 = vcmask 261120
        %v334 = vsel %vm332, %v315, 0
        %336 = vmatprep.subr.bf16.mxu0 0
        %337 = vmatpush1.bf16.msra.mxu0 %v328
        %338 = vmatprep.subr.bf16.mxu0 0
        %339 = vmatpush1.bf16.msra.mxu0 %v329
        %340 = vmatprep.subr.bf16.mxu0 0
        %341 = vmatpush1.bf16.msra.mxu0 0
        %342 = vmatprep.subr.bf16.mxu0 0
        %343 = vmatpush1.bf16.msra.mxu0 0
        %344 = vmatprep.subr.bf16.mxu0 0
        %345 = vmatpush1.bf16.msra.mxu0 0
        %346 = vmatprep.subr.bf16.mxu0 0
        %347 = vmatpush1.bf16.msra.mxu0 0
        %348 = vmatprep.subr.bf16.mxu0 0
        %349 = vmatpush1.bf16.msra.mxu0 0
        %350 = vmatprep.subr.bf16.mxu0 0
        %351 = vmatpush1.bf16.msra.mxu0 0
        %352 = vmatprep.subr.bf16.mxu0 0
        %353 = vmatpush1.bf16.msra.mxu0 0
        %354 = vmatprep.subr.bf16.mxu0 0
        %355 = vmatpush1.bf16.msra.mxu0 0
        %356 = vmatprep.subr.bf16.mxu0 0
        %357 = vmatpush1.bf16.msra.mxu0 0
        %358 = vmatprep.subr.bf16.mxu0 0
        %359 = vmatpush1.bf16.msra.mxu0 0
        %360 = vmatprep.subr.bf16.mxu0 0
        %361 = vmatpush1.bf16.msra.mxu0 0
        %362 = vmatprep.subr.bf16.mxu0 0
        %363 = vmatpush1.bf16.msra.mxu0 0
        %364 = vmatprep.subr.bf16.mxu0 0
        %365 = vmatpush1.bf16.msra.mxu0 0
        %366 = vmatprep.subr.bf16.mxu0 0
        %367 = vmatpush1.bf16.msra.mxu0 0
        %368 = vmatprep.mubr.bf16.mxu0 0
        %369 = vmatmul.mubr.bf16.gmra.mrb[0].mxu0 %v334
        %v370 = vpop.f32.mrb[0].mxu0
        %v371 = vadd.f32 0.0, %v370
        %v372 = vpop.f32.mrb[0].mxu0
        %v373 = vpop.f32.mrb[0].mxu0
        %v374 = vpop.f32.mrb[0].mxu0
        %375 = vdwg.mxu0
        %p376 = scmp.lt.s32.totalorder %s24, 6
        // Predicated region
        $region45: #{tpu_custom_call.1} parent=39 // pred_check
          %p377 = pneg %p376
        $region46: #{tpu_custom_call.1} parent=39 // pred_check_branch
          %379 = sbr.rel (%p377) target = $region48
        $region47: #{tpu_custom_call.1} parent=39 // pred_region
          %381 = vrot.lane.b32.xlu0 %v371, 124
          %v382 = vpop.permute.xlu0 %381
          %384 = vrot.lane.b32.xlu0 %v371, 4
          %v385 = vpop.permute.xlu0 %384
          %vm387 = vcmask 31744
          %v388 = vsel %vm387, %v382, %v385
          %v389 = vld [vmem:[%s283] sm:$0xff]
          %v390 = vmul.f32 %v371, %v389
          %v391 = vld [vmem:[%s287] sm:$0xff]
          %v392 = vmul.f32 %v388, %v391
          %v393 = vadd.f32 %v390, %v392
          %v394 = vpack.c.bf16 %v393, %v393
          %vm395 = vcmask 60416
          %396 = vst.msk [vmem:[%s270] sm:$0xf] %vm395, %v394
        $region48: #{tpu_custom_call.1} parent=39 // pred_fallthru
          _
        %p397 = scmp.ge.s32.totalorder %s24, 6
        // Predicated region
        $region49: #{tpu_custom_call.1} parent=39 // pred_check
          %p398 = pneg %p397
        $region50: #{tpu_custom_call.1} parent=39 // pred_check_branch
          %400 = sbr.rel (%p398) target = $region52
        $region51: #{tpu_custom_call.1} parent=39 // pred_region
          %v401 = vpack.c.bf16 %v371, %v371
          %vm402 = vcmask 60416
          %403 = vst.msk [vmem:[%s270] sm:$0xf] %vm402, %v401
        $region52: #{tpu_custom_call.1} parent=39 // pred_fallthru
          _
        %s404 = sand.u32 %s166, 1
        %s405 = scalar_lea.sflag [#allocation4], %s404
        %s406 = sand.u32 %s166, 1
        %s407 = smul.addr %s406, 4
        %s408 = scalar_lea.vmem [#allocation3], %s407
        // Predicated region
        $region53: #{tpu_custom_call.1} parent=39 // pred_check
          %p409 = pneg %p176
        $region54: #{tpu_custom_call.1} parent=39 // pred_check_branch
          %411 = sbr.rel (%p409) target = $region56
        $region55: #{tpu_custom_call.1} parent=39 // pred_region
          %s413 = ssub.s32 64, 64
          %414 = vsyncadd %s405, %s413
          %s415 = sadd.s32 %s23, %s24
          %s416 = smul.addr %s415, 64
          %s417 = scalar_lea.hbm %s5, %s416
          %s419 = sshll.u32 %s408, 4
          %s420 = int_to_ptr.vmem [resolvable:$true] %s419
          %422 = dma.vmem_to_hbm [thread:$0]  %s420, 64, %s417, %s405
        $region56: #{tpu_custom_call.1} parent=39 // pred_fallthru
          _
      $region40: #{tpu_custom_call.1} parent=5 // pred_fallthru
        _
      %p423 = scmp.le.s32.totalorder 2, %s14
      // Predicated region
      $region57: #{tpu_custom_call.1} parent=5 // pred_check
        %p424 = pneg %p423
      $region58: #{tpu_custom_call.1} parent=5 // pred_check_branch
        %426 = sbr.rel (%p424) target = $region60
      $region59: #{tpu_custom_call.1} parent=5 // pred_region
        %s427 = ssub.s32 %s14, 2
        // Predicated region
        $region61: #{tpu_custom_call.1} parent=59 // pred_check
          %p428 = pneg %p182
        $region62: #{tpu_custom_call.1} parent=59 // pred_check_branch
          %430 = sbr.rel (%p428) target = $region64
        $region63: #{tpu_custom_call.1} parent=59 // pred_region
          %s431 = sand.u32 %s167, 1
          %s432 = scalar_lea.sflag [#allocation4], %s431
          %s433 = sand.u32 %s167, 1
          %s434 = smul.addr %s433, 4
          %s435 = scalar_lea.vmem [#allocation3], %s434
          %436 = dma.done %s432, 64
        $region64: #{tpu_custom_call.1} parent=59 // pred_fallthru
          _
      $region60: #{tpu_custom_call.1} parent=5 // pred_fallthru
        _
    $region6: #{tpu_custom_call.1} parent=1 // loop_footer
      %s18 = sadd.s32 1, %s14
    $region7: #{tpu_custom_call.1} parent=1 // loop_footer_branch
      %13 = sbr.rel target = $region3
    $region8: #{tpu_custom_call.1} parent=1 // loop_exit
      _
    %437 = vsyncpa [#allocation4], 1
    %s438 = scalar_lea.sflag [#allocation4], 1
    %439 = vsyncpa %s438, 1

</llo_original>
